<compile_context>
chip_gen: v7x
topology: tpu7x:2x2x1
jax: 0.10.0
libtpu: 0.0.40
codegen_flags: <defaults>
</compile_context>

<pallas_src>
import jax
import jax.numpy as jnp
from jax.experimental import pallas as pl
from jax.experimental.pallas import tpu as pltpu

_MIB = 1024 * 1024


def _round_up(x, m):
    return ((x + m - 1) // m) * m


def _vmem_capacity_bytes():
    try:
        return int(pltpu.get_tpu_info().vmem_capacity_bytes)
    except Exception:
        return 64 * _MIB  # conservative (v7x-sized) fallback


def _mac_kernel_full_hw(x_ref, o_ref):
    # x_ref: (row_tile, hw) block in VMEM; reduce over the lane (last) axis
    # and lay per-row maxima along the lane axis of the (1, row_tile) slab.
    m = jnp.max(x_ref[...], axis=-1)
    o_ref[...] = m.reshape(1, -1)


def _make_mac_kernel_split_hw(hw, hw_tile, num_hw_tiles, fill_value, needs_mask):
    def kernel(x_ref, o_ref, acc_ref):
        k = pl.program_id(1)
        x = x_ref[...]
        if needs_mask:
            col = k * hw_tile + jax.lax.broadcasted_iota(jnp.int32, x.shape, 1)
            x = jnp.where(col < hw, x, fill_value)
        m = jnp.max(x, axis=-1, keepdims=True)  # (row_tile, 1), input dtype

        @pl.when(k == 0)
        def _():
            acc_ref[...] = m

        @pl.when(k > 0)
        def _():
            acc_ref[...] = jnp.maximum(acc_ref[...], m)

        @pl.when(k == num_hw_tiles - 1)
        def _():
            # Column output: total output traffic is only rows*itemsize bytes,
            # so the masked store is negligible and avoids any per-tile relayout.
            o_ref[...] = acc_ref[...]

    return kernel


def mac(x: jax.Array, *, target_block_bytes=None) -> jax.Array:
    """Global spatial max pooling: equivalent to LF.mac(x) / F.max_pool2d(x, (H, W))."""
    B, C, H, W = x.shape
    rows = B * C
    hw = H * W
    xf = x.reshape(rows, hw)
    dtype = x.dtype
    itemsize = jnp.dtype(dtype).itemsize

    vmem_cap = _vmem_capacity_bytes()
    if target_block_bytes is None:
        # ~16 MiB blocks on 128 MiB parts (v5e/v6e), ~10 MiB on 64 MiB (v7x);
        # double-buffered input stays comfortably inside scoped VMEM.
        target_block_bytes = int(min(16 * _MIB, vmem_cap // 6))
    budget = max(int(target_block_bytes), 8 * 1024)

    # Sublane packing multiple: 8 for 4-byte, 16 for 2-byte, 32 for 1-byte dtypes.
    sub_mult = max(8, 32 // itemsize)
    row_bytes = hw * itemsize

    cost = pl.CostEstimate(
        flops=rows * hw,
        transcendentals=0,
        bytes_accessed=rows * hw * itemsize + rows * itemsize,
    )

    # Decide whether a full-hw block at the minimum row count fits the budget.
    split_hw = sub_mult * row_bytes > budget
    hw_tile = hw
    row_tile = rows
    if split_hw:
        row_tile = min(_round_up(rows, sub_mult), 256)
        hw_tile = max(512, (budget // (row_tile * itemsize)) // 128 * 128)
        if hw_tile >= hw:
            split_hw = False
            hw_tile = hw

    if not split_hw:
        # ---- Full-hw path: one DMA + one lane reduction per row tile. ----
        cap = max(sub_mult, (budget // row_bytes) // sub_mult * sub_mult)
        cap = min(cap, 1024)  # bound vreg pressure / relayout chain length
        if rows <= cap:
            row_tile = rows
            # Emit >=2 "parallel" grid steps for non-trivial inputs so v7x's
            # two TensorCores both get work (megacore sharding).
            if rows >= 2 * sub_mult and rows * row_bytes >= 512 * 1024:
                row_tile = _round_up(pl.cdiv(rows, 2), sub_mult)
        else:
            row_tile = cap
        num_row_tiles = pl.cdiv(rows, row_tile)

        in_block_bytes = row_tile * hw * itemsize
        vmem_limit = int(min(max(2 * in_block_bytes + 4 * _MIB, 16 * _MIB),
                             (vmem_cap * 7) // 8))

        out = pl.pallas_call(
            _mac_kernel_full_hw,
            out_shape=jax.ShapeDtypeStruct((num_row_tiles, row_tile), dtype),
            grid=(num_row_tiles,),
            in_specs=[pl.BlockSpec((row_tile, hw), lambda i: (i, 0))],
            out_specs=pl.BlockSpec((1, row_tile), lambda i: (i, 0)),
            compiler_params=pltpu.CompilerParams(
                dimension_semantics=("parallel",),
                vmem_limit_bytes=vmem_limit,
            ),
            cost_estimate=cost,
        )(xf)
    else:
        # ---- Split-hw path (huge spatial size): running max over hw tiles. ----
        num_hw_tiles = pl.cdiv(hw, hw_tile)
        num_row_tiles = pl.cdiv(rows, row_tile)
        needs_mask = (hw % hw_tile) != 0
        if jnp.issubdtype(dtype, jnp.floating):
            fill_value = float("-inf")
        elif jnp.issubdtype(dtype, jnp.integer):
            fill_value = int(jnp.iinfo(dtype).min)
        else:
            fill_value = False

        kernel = _make_mac_kernel_split_hw(hw, hw_tile, num_hw_tiles,
                                           fill_value, needs_mask)

        in_block_bytes = row_tile * hw_tile * itemsize
        vmem_limit = int(min(max(2 * in_block_bytes + 4 * _MIB, 16 * _MIB),
                             (vmem_cap * 7) // 8))

        out = pl.pallas_call(
            kernel,
            out_shape=jax.ShapeDtypeStruct((num_row_tiles * row_tile, 1), dtype),
            grid=(num_row_tiles, num_hw_tiles),
            in_specs=[pl.BlockSpec((row_tile, hw_tile), lambda i, k: (i, k))],
            out_specs=pl.BlockSpec((row_tile, 1), lambda i, k: (i, 0)),
            scratch_shapes=[pltpu.VMEM((row_tile, 1), dtype)],
            compiler_params=pltpu.CompilerParams(
                dimension_semantics=("parallel", "arbitrary"),
                vmem_limit_bytes=vmem_limit,
            ),
            cost_estimate=cost,
        )(xf)

    # Rows of the (possibly ragged) last tile beyond `rows` are padding; drop
    # them, then restore the NCHW (B, C, 1, 1) shape.
    return out.reshape(-1)[:rows].reshape(B, C, 1, 1)


if __name__ == "__main__":
    key = jax.random.PRNGKey(0)

    # Main case: small NCHW input (full-hw path, single row tile).
    B, C, H, W = 2, 4, 16, 16
    x = jax.random.normal(key, (B, C, H, W), dtype=jnp.float32)
    y = jax.block_until_ready(mac(x))
    y_ref = jnp.max(x, axis=(2, 3), keepdims=True)
    assert y.shape == (B, C, 1, 1), y.shape
    assert jnp.allclose(y, y_ref), "MAC mismatch (full-hw, single tile)"

    # Force the row-tiled grid (ragged last row tile) with a tiny block budget.
    x2 = jax.random.normal(jax.random.PRNGKey(1), (2, 50, 8, 8), dtype=jnp.float32)
    y2 = jax.block_until_ready(mac(x2, target_block_bytes=8 * 1024))
    y2_ref = jnp.max(x2, axis=(2, 3), keepdims=True)
    assert y2.shape == (2, 50, 1, 1), y2.shape
    assert jnp.allclose(y2, y2_ref), "MAC mismatch (row-tiled grid)"

    # Force the split-hw accumulator path (ragged hw tail masked) with a tiny budget.
    x3 = jax.random.normal(jax.random.PRNGKey(2), (2, 8, 10, 100), dtype=jnp.float32)
    y3 = jax.block_until_ready(mac(x3, target_block_bytes=16 * 1024))
    y3_ref = jnp.max(x3, axis=(2, 3), keepdims=True)
    assert y3.shape == (2, 8, 1, 1), y3.shape
    assert jnp.allclose(y3, y3_ref), "MAC mismatch (split-hw accumulator)"

    print("KERNEL_OK")
</pallas_src>

<mosaic_0001>
module attributes {stable_mosaic.version = 11 : i64} {
  func.func @_mac_kernel_full_hw(%arg0: i32, %arg1: memref<8x256xf32, #tpu.memory_space<vmem>>, %arg2: memref<1x8xf32, #tpu.memory_space<vmem>>) attributes {dimension_semantics = [#tpu.dimension_semantics<parallel>], iteration_bounds = array<i64: 1>, scalar_prefetch = 0 : i64, scratch_operands = 0 : i64, tpu.core_type = #tpu.core_type<tc>, window_params = [{transform_indices = @transform_0, window_bounds = array<i64: 8, 256>}, {transform_indices = @transform_1, window_bounds = array<i64: 1, 8>}]} {
    %c0 = arith.constant 0 : index
    %c0_0 = arith.constant 0 : index
    %0 = vector.load %arg1[%c0, %c0_0] : memref<8x256xf32, #tpu.memory_space<vmem>>, vector<8x256xf32>
    %cst = arith.constant dense<0xFF800000> : vector<8xf32>
    %1 = vector.multi_reduction <maximumf>, %0, %cst [1] : vector<8x256xf32> to vector<8xf32>
    %2 = vector.shape_cast %1 : vector<8xf32> to vector<1x8xf32>
    %c0_1 = arith.constant 0 : index
    %c0_2 = arith.constant 0 : index
    %3 = vector.load %arg2[%c0_1, %c0_2] : memref<1x8xf32, #tpu.memory_space<vmem>>, vector<1x8xf32>
    tpu.vector_store %arg2[%c0_1, %c0_2], %2 {strides = array<i32>} : memref<1x8xf32, #tpu.memory_space<vmem>>, vector<1x8xf32>,
    return
  }
  func.func @transform_0(%arg0: i32) -> (i32, i32) {
    %c0_i32 = arith.constant 0 : i32
    %c0_i32_0 = arith.constant 0 : i32
    return %arg0, %c0_i32 : i32, i32
  }
  func.func @transform_1(%arg0: i32) -> (i32, i32) {
    %c0_i32 = arith.constant 0 : i32
    %c0_i32_0 = arith.constant 0 : i32
    return %arg0, %c0_i32 : i32, i32
  }
}

</mosaic_0001>

<llo_original>
// kernel: tpu_custom_call.1
$region0: #{tpu_custom_call.1}
  #allocation0 [shape = 'u32[]', space=smem, size = 0x4, offset = 0x4, fixed_abs, tag = 'smem constant byte address 0x4 - core index']
  #allocation1 [shape = 'u32[144,128]{1,0:T(1,128)}', space=vmem, size = 0x12000, scoped, tag = 'internal scratch']
  %s0 = inlined_call_operand.hbm [shape: f32[8,256], index: 0, kind: input, shape index: {}]
  %s1 = inlined_call_operand.hbm [shape: f32[1,8], index: 1, kind: output, shape index: {}]
  %s2 = sld [smem:[#allocation0]]
  $region18: #{tpu_custom_call.1} parent=0
    _
  %s4 = ssub.s32 1, %s2
  %s5 = scalar_select 0, %s4, %s2
  $region1: #{tpu_custom_call.1} parent=0
    #allocation2 [shape = 'u8[8192]{0}', space=vmem, size = 0x2000, scoped, tag = 'input window, operand 0, single buffered']
    #allocation3 [shape = 's32[1]{0}', space=sflag, size = 0x4, scoped, tag = 'scoped memory for tpu_custom_call.1']
    #allocation4 [shape = 's32[1]{0}', space=sflag, size = 0x4, scoped, tag = 'scoped memory for tpu_custom_call.1']
    #allocation5 [shape = 'u8[512]{0}', space=vmem, size = 0x400, scoped, tag = 'output window, operand 0, single buffered']
    %6 = vsyncpa [#allocation3], 0
    %7 = vsyncpa [#allocation4], 0
    // Predicated region
    $region2: #{tpu_custom_call.1} parent=1 // pred_check
      _
    $region3: #{tpu_custom_call.1} parent=1 // pred_check_branch
      %9 = sbr.rel (0) target = $region5
    $region4: #{tpu_custom_call.1} parent=1 // pred_region
      %s11 = ssub.s32 256, 256
      %12 = vsyncadd [#allocation3], %s11
      %s14 = sshll.u32 [#allocation2], 4
      %s15 = int_to_ptr.vmem [resolvable:$true] %s14
      %17 = dma.hbm_to_vmem [thread:$0]  %s0, 256, %s15, [#allocation3]
    $region5: #{tpu_custom_call.1} parent=1 // pred_fallthru
      _
    // Predicated region
    $region6: #{tpu_custom_call.1} parent=1 // pred_check
      _
    $region7: #{tpu_custom_call.1} parent=1 // pred_check_branch
      %19 = sbr.rel (0) target = $region9
    $region8: #{tpu_custom_call.1} parent=1 // pred_region
      %20 = dma.done [#allocation3], 256
    $region9: #{tpu_custom_call.1} parent=1 // pred_fallthru
      _
    %v21 = vld [vmem:[#allocation2] sm:$0xff]
    %v22 = vld [vmem:[#allocation2 + $0x8] sm:$0xff]
    %v23 = vmax.f32 %v21, %v22
    %24 = vmax.xlane.f32.xlu0 %v23
    %v25 = vpop.xlane.xlu0 %24
    %v27 = vlaneseq
    %v28 = vand.u32 %v27, 127
    %v29 = vlaneseq
    %v30 = vshrl.u32 %v29, 7
    %v31 = vsub.s32 %v28, %v30
    %v32 = vrot.slane %v25, %v31
    %vm34 = vcmask 57344
    %35 = vst.msk [vmem:[#allocation5] sm:$0x1] %vm34, %v32
    // Predicated region
    $region10: #{tpu_custom_call.1} parent=1 // pred_check
      _
    $region11: #{tpu_custom_call.1} parent=1 // pred_check_branch
      %37 = sbr.rel (0) target = $region13
    $region12: #{tpu_custom_call.1} parent=1 // pred_region
      %s39 = ssub.s32 16, 16
      %40 = vsyncadd [#allocation4], %s39
      %s42 = sshll.u32 [#allocation5], 4
      %s43 = int_to_ptr.vmem [resolvable:$true] %s42
      %45 = dma.vmem_to_hbm [thread:$0]  %s43, 16, %s1, [#allocation4]
    $region13: #{tpu_custom_call.1} parent=1 // pred_fallthru
      _
    // Predicated region
    $region14: #{tpu_custom_call.1} parent=1 // pred_check
      _
    $region15: #{tpu_custom_call.1} parent=1 // pred_check_branch
      %47 = sbr.rel (0) target = $region17
    $region16: #{tpu_custom_call.1} parent=1 // pred_region
      %48 = dma.done [#allocation4], 16
    $region17: #{tpu_custom_call.1} parent=1 // pred_fallthru
      _
    %49 = vsyncpa [#allocation3], 1
    %50 = vsyncpa [#allocation4], 1

</llo_original>
